<compile_context>
chip_gen: v6e
topology: v6e:2x2x1
jax: 0.10.0
libtpu: 0.0.40
codegen_flags: <defaults>
</compile_context>

<pallas_src>
import functools

import jax
import jax.numpy as jnp
from jax import lax
from jax.experimental import pallas as pl
from jax.experimental.pallas import tpu as pltpu


# ----------------------------------------------------------------------------
# Generic tiled linear: (N, K) @ (K, V) + b  -> (N, V)
# Used for the hoisted LSTM input projection and for the decoder.
# ----------------------------------------------------------------------------
def _linear_kernel(x_ref, w_ref, b_ref, o_ref):
    acc = jnp.dot(x_ref[...], w_ref[...], preferred_element_type=jnp.float32)
    o_ref[...] = (acc + b_ref[...]).astype(o_ref.dtype)


def tiled_linear(x, w_t, bias, out_dtype=jnp.float32, *, row_tile=256, col_tile=512):
    """x: (N, K); w_t: (K, V); bias: (1, V)."""
    N, K = x.shape
    V = w_t.shape[-1]
    tn = N if N <= row_tile else row_tile      # row tile is a multiple of 8 (or full N)
    tv = V if V <= col_tile else col_tile      # col tile is a multiple of 128 (or full V)
    grid = (pl.cdiv(N, tn), pl.cdiv(V, tv))
    return pl.pallas_call(
        _linear_kernel,
        out_shape=jax.ShapeDtypeStruct((N, V), out_dtype),
        grid_spec=pltpu.PrefetchScalarGridSpec(
            num_scalar_prefetch=0,
            grid=grid,
            in_specs=[
                pl.BlockSpec((tn, K), lambda i, j: (i, 0)),
                pl.BlockSpec((K, tv), lambda i, j: (0, j)),
                pl.BlockSpec((1, tv), lambda i, j: (0, j)),
            ],
            out_specs=pl.BlockSpec((tn, tv), lambda i, j: (i, j)),
        ),
        compiler_params=pltpu.CompilerParams(
            dimension_semantics=("parallel", "parallel")),
    )(x, w_t, bias)


# ----------------------------------------------------------------------------
# LSTM recurrence over precomputed input gates.
# xg: (T, B, 4H) = x @ W_ih^T + (b_ih + b_hh)  (precomputed by tiled_linear).
# Grid iterates over time CHUNKS; inside each chunk an in-kernel fori_loop runs
# the recurrence with h/c carried in f32 VMEM scratch.  PyTorch gate order i,f,g,o.
# ----------------------------------------------------------------------------
def _lstm_chunk_kernel(xg_ref, whh_ref, h0_ref, c0_ref,
                       out_ref, hT_ref, cT_ref,
                       h_scr, c_scr, *, seq_len, chunk):
    c_idx = pl.program_id(0)
    H = h0_ref.shape[-1]

    @pl.when(c_idx == 0)
    def _():
        h_scr[...] = h0_ref[...]
        c_scr[...] = c0_ref[...]

    # Number of valid timesteps in this chunk (last chunk may be partial).
    n_valid = jnp.minimum(chunk, seq_len - c_idx * chunk)

    def step(t, carry):
        gates = (xg_ref[t].astype(jnp.float32)
                 + jnp.dot(h_scr[...].astype(whh_ref.dtype), whh_ref[...],
                           preferred_element_type=jnp.float32))        # (B, 4H)
        i_g = jax.nn.sigmoid(gates[:, 0 * H:1 * H])
        f_g = jax.nn.sigmoid(gates[:, 1 * H:2 * H])
        g_g = jnp.tanh(gates[:, 2 * H:3 * H])
        o_g = jax.nn.sigmoid(gates[:, 3 * H:4 * H])

        c_new = f_g * c_scr[...] + i_g * g_g
        h_new = o_g * jnp.tanh(c_new)

        c_scr[...] = c_new
        h_scr[...] = h_new
        out_ref[t] = h_new.astype(out_ref.dtype)
        return carry

    lax.fori_loop(0, n_valid, step, 0)

    # Final hidden state written once, after the last chunk.
    @pl.when(c_idx == pl.num_programs(0) - 1)
    def _():
        hT_ref[...] = h_scr[...]
        cT_ref[...] = c_scr[...]


def lstm_recurrent(xg, whh_t, h0, c0, *, time_chunk=64):
    """xg: (T, B, 4H) f32; whh_t: (H, 4H) bf16; h0/c0: (B, H) f32."""
    T, B, G = xg.shape
    H = h0.shape[-1]
    Tc = min(T, time_chunk)
    n_chunks = pl.cdiv(T, Tc)
    out, hT, cT = pl.pallas_call(
        functools.partial(_lstm_chunk_kernel, seq_len=T, chunk=Tc),
        out_shape=(jax.ShapeDtypeStruct((T, B, H), jnp.bfloat16),
                   jax.ShapeDtypeStruct((B, H), jnp.float32),
                   jax.ShapeDtypeStruct((B, H), jnp.float32)),
        grid_spec=pltpu.PrefetchScalarGridSpec(
            num_scalar_prefetch=0,
            grid=(n_chunks,),
            in_specs=[
                pl.BlockSpec((Tc, B, G), lambda c: (c, 0, 0)),   # precomputed gates
                pl.BlockSpec((H, G), lambda c: (0, 0)),          # W_hh^T (bf16)
                pl.BlockSpec((B, H), lambda c: (0, 0)),          # h0
                pl.BlockSpec((B, H), lambda c: (0, 0)),          # c0
            ],
            out_specs=[
                pl.BlockSpec((Tc, B, H), lambda c: (c, 0, 0)),   # hidden sequence
                pl.BlockSpec((B, H), lambda c: (0, 0)),          # final h
                pl.BlockSpec((B, H), lambda c: (0, 0)),          # final c
            ],
            scratch_shapes=[pltpu.VMEM((B, H), jnp.float32),     # h carry
                            pltpu.VMEM((B, H), jnp.float32)]),   # c carry
        compiler_params=pltpu.CompilerParams(
            dimension_semantics=("arbitrary",)),                 # time is a carried loop
    )(xg, whh_t, h0, c0)
    return out, hT, cT


# ----------------------------------------------------------------------------
# Model wrapper (matches RNNLanguageModel.forward / init_hidden semantics).
# NOTE: no Python ints are stored inside the params pytree -- all sizes are
# derived from array shapes so they stay static under jax.jit.
# ----------------------------------------------------------------------------
def init_params(key, vocab_size, emb_size, hidden_sizes):
    keys = jax.random.split(key, 2 + 4 * len(hidden_sizes) + 2)
    k = iter(keys)
    params = {}
    params["emb"] = jax.random.normal(next(k), (vocab_size, emb_size), jnp.float32) * 0.1
    layers = []
    in_size = emb_size
    for H in hidden_sizes:
        wih = jax.random.normal(next(k), (4 * H, in_size), jnp.float32) * 0.1
        whh = jax.random.normal(next(k), (4 * H, H), jnp.float32) * 0.1
        bih = jax.random.normal(next(k), (4 * H,), jnp.float32) * 0.1
        bhh = jax.random.normal(next(k), (4 * H,), jnp.float32) * 0.1
        layers.append({
            "wih_t": wih.T.astype(jnp.bfloat16),            # (in, 4H)
            "whh_t": whh.T.astype(jnp.bfloat16),            # (H, 4H)
            "b": (bih + bhh).reshape(1, 4 * H),             # (1, 4H) f32
        })
        in_size = H
    params["layers"] = layers
    dec_w = jax.random.normal(next(k), (vocab_size, hidden_sizes[-1]), jnp.float32) * 0.1
    dec_b = jax.random.normal(next(k), (vocab_size,), jnp.float32) * 0.1
    params["dec_w_t"] = dec_w.T.astype(jnp.bfloat16)        # (H, V)
    params["dec_b"] = dec_b.reshape(1, vocab_size)
    return params


def init_hidden(batch_size, hidden_sizes):
    return [(jnp.zeros((batch_size, H), jnp.float32),
             jnp.zeros((batch_size, H), jnp.float32)) for H in hidden_sizes]


def rnn_language_model_forward(params, tokens, hidden):
    """tokens: (T, B) int32.  Returns ((T, B, V) logits f32, new hidden list)."""
    T, B = tokens.shape
    # Encoder: embedding lookup (plain-JAX gather glue).  Dropout p=0.0 -> identity.
    emb = jnp.take(params["emb"], tokens, axis=0)                     # (T, B, E) f32
    x = emb.astype(jnp.bfloat16)                                      # bf16 activations
    new_hidden = []
    for layer, (h0, c0) in zip(params["layers"], hidden):
        H = layer["whh_t"].shape[0]                                   # static (shape-derived)
        E_in = x.shape[-1]
        # Hoisted input projection + bias for the whole sequence: one big matmul.
        xg = tiled_linear(x.reshape(T * B, E_in), layer["wih_t"], layer["b"],
                          out_dtype=jnp.float32)                      # (T*B, 4H) f32
        xg = xg.reshape(T, B, 4 * H)
        # Serial recurrence: only h @ W_hh + elementwise cell update per step.
        x, hT, cT = lstm_recurrent(xg, layer["whh_t"], h0, c0)
        new_hidden.append((hT, cT))
    H = x.shape[-1]
    flat = x.reshape(T * B, H)
    decoded = tiled_linear(flat, params["dec_w_t"], params["dec_b"],
                           out_dtype=jnp.float32)                     # (T*B, V) f32
    V = decoded.shape[-1]
    return decoded.reshape(T, B, V), new_hidden


if __name__ == "__main__":
    # (8,128)-aligned small shapes: B multiple of 8, E/H/V multiples of 128.
    vocab_size = 256
    emb_size = 128
    hidden_sizes = [128, 128]
    seq_len = 8
    batch = 8

    key = jax.random.PRNGKey(0)
    k_params, k_tok = jax.random.split(key)
    params = init_params(k_params, vocab_size, emb_size, hidden_sizes)
    tokens = jax.random.randint(k_tok, (seq_len, batch), 0, vocab_size, dtype=jnp.int32)
    hidden = init_hidden(batch, hidden_sizes)

    fwd = jax.jit(rnn_language_model_forward)
    logits, new_hidden = fwd(params, tokens, hidden)
    jax.block_until_ready(logits)
    for h, c in new_hidden:
        jax.block_until_ready(h)
        jax.block_until_ready(c)

    assert logits.shape == (seq_len, batch, vocab_size)
    assert logits.dtype == jnp.float32
    assert all(h.shape == (batch, H) and c.shape == (batch, H)
               for (h, c), H in zip(new_hidden, hidden_sizes))
    print("KERNEL_OK")
</pallas_src>

<mosaic_0001>
module attributes {stable_mosaic.version = 11 : i64} {
  func.func @_linear_kernel(%arg0: i32, %arg1: i32, %arg2: memref<64x128xbf16, #tpu.memory_space<vmem>>, %arg3: memref<128x256xbf16, #tpu.memory_space<vmem>>, %arg4: memref<1x256xf32, #tpu.memory_space<vmem>>, %arg5: memref<64x256xf32, #tpu.memory_space<vmem>>) attributes {dimension_semantics = [#tpu.dimension_semantics<parallel>, #tpu.dimension_semantics<parallel>], iteration_bounds = array<i64: 1, 1>, scalar_prefetch = 0 : i64, scratch_operands = 0 : i64, tpu.core_type = #tpu.core_type<tc>, window_params = [{transform_indices = @transform_0, window_bounds = array<i64: 64, 128>}, {transform_indices = @transform_1, window_bounds = array<i64: 128, 256>}, {transform_indices = @transform_2, window_bounds = array<i64: 1, 256>}, {transform_indices = @transform_3, window_bounds = array<i64: 64, 256>}]} {
    %c0 = arith.constant 0 : index
    %c0_0 = arith.constant 0 : index
    %0 = vector.load %arg2[%c0, %c0_0] : memref<64x128xbf16, #tpu.memory_space<vmem>>, vector<64x128xbf16>
    %c0_1 = arith.constant 0 : index
    %c0_2 = arith.constant 0 : index
    %1 = vector.load %arg3[%c0_1, %c0_2] : memref<128x256xbf16, #tpu.memory_space<vmem>>, vector<128x256xbf16>
    %cst = arith.constant dense<0.000000e+00> : vector<64x256xf32>
    %2 = tpu.matmul %0, %1, %cst {dimension_numbers = #tpu.dot_dimension_numbers<[1], [0], [0], [1], [0, 0, 1, 1], [], []>} : vector<64x128xbf16>, vector<128x256xbf16>, vector<64x256xf32> -> vector<64x256xf32>
    %c0_3 = arith.constant 0 : index
    %c0_4 = arith.constant 0 : index
    %3 = vector.load %arg4[%c0_3, %c0_4] : memref<1x256xf32, #tpu.memory_space<vmem>>, vector<1x256xf32>
    %4 = vector.broadcast %3 : vector<1x256xf32> to vector<64x256xf32>
    %5 = arith.addf %2, %4 : vector<64x256xf32>
    %c0_5 = arith.constant 0 : index
    %c0_6 = arith.constant 0 : index
    %6 = vector.load %arg5[%c0_5, %c0_6] : memref<64x256xf32, #tpu.memory_space<vmem>>, vector<64x256xf32>
    tpu.vector_store %arg5[%c0_5, %c0_6], %5 {strides = array<i32>} : memref<64x256xf32, #tpu.memory_space<vmem>>, vector<64x256xf32>,
    return
  }
  func.func @transform_0(%arg0: i32, %arg1: i32) -> (i32, i32) {
    %c0_i32 = arith.constant 0 : i32
    %c0_i32_0 = arith.constant 0 : i32
    return %arg0, %c0_i32 : i32, i32
  }
  func.func @transform_1(%arg0: i32, %arg1: i32) -> (i32, i32) {
    %c0_i32 = arith.constant 0 : i32
    %c0_i32_0 = arith.constant 0 : i32
    return %c0_i32, %arg1 : i32, i32
  }
  func.func @transform_2(%arg0: i32, %arg1: i32) -> (i32, i32) {
    %c0_i32 = arith.constant 0 : i32
    %c0_i32_0 = arith.constant 0 : i32
    return %c0_i32, %arg1 : i32, i32
  }
  func.func @transform_3(%arg0: i32, %arg1: i32) -> (i32, i32) {
    %c0_i32 = arith.constant 0 : i32
    return %arg0, %arg1 : i32, i32
  }
}

module attributes {stable_mosaic.version = 11 : i64} {
  func.func @_linear_kernel(%arg0: i32, %arg1: i32, %arg2: memref<64x128xbf16, #tpu.memory_space<vmem>>, %arg3: memref<128x512xbf16, #tpu.memory_space<vmem>>, %arg4: memref<1x512xf32, #tpu.memory_space<vmem>>, %arg5: memref<64x512xf32, #tpu.memory_space<vmem>>) attributes {dimension_semantics = [#tpu.dimension_semantics<parallel>, #tpu.dimension_semantics<parallel>], iteration_bounds = array<i64: 1, 1>, scalar_prefetch = 0 : i64, scratch_operands = 0 : i64, tpu.core_type = #tpu.core_type<tc>, window_params = [{transform_indices = @transform_0, window_bounds = array<i64: 64, 128>}, {transform_indices = @transform_1, window_bounds = array<i64: 128, 512>}, {transform_indices = @transform_2, window_bounds = array<i64: 1, 512>}, {transform_indices = @transform_3, window_bounds = array<i64: 64, 512>}]} {
    %c0 = arith.constant 0 : index
    %c0_0 = arith.constant 0 : index
    %0 = vector.load %arg2[%c0, %c0_0] : memref<64x128xbf16, #tpu.memory_space<vmem>>, vector<64x128xbf16>
    %c0_1 = arith.constant 0 : index
    %c0_2 = arith.constant 0 : index
    %1 = vector.load %arg3[%c0_1, %c0_2] : memref<128x512xbf16, #tpu.memory_space<vmem>>, vector<128x512xbf16>
    %cst = arith.constant dense<0.000000e+00> : vector<64x512xf32>
    %2 = tpu.matmul %0, %1, %cst {dimension_numbers = #tpu.dot_dimension_numbers<[1], [0], [0], [1], [0, 0, 1, 1], [], []>} : vector<64x128xbf16>, vector<128x512xbf16>, vector<64x512xf32> -> vector<64x512xf32>
    %c0_3 = arith.constant 0 : index
    %c0_4 = arith.constant 0 : index
    %3 = vector.load %arg4[%c0_3, %c0_4] : memref<1x512xf32, #tpu.memory_space<vmem>>, vector<1x512xf32>
    %4 = vector.broadcast %3 : vector<1x512xf32> to vector<64x512xf32>
    %5 = arith.addf %2, %4 : vector<64x512xf32>
    %c0_5 = arith.constant 0 : index
    %c0_6 = arith.constant 0 : index
    %6 = vector.load %arg5[%c0_5, %c0_6] : memref<64x512xf32, #tpu.memory_space<vmem>>, vector<64x512xf32>
    tpu.vector_store %arg5[%c0_5, %c0_6], %5 {strides = array<i32>} : memref<64x512xf32, #tpu.memory_space<vmem>>, vector<64x512xf32>,
    return
  }
  func.func @transform_0(%arg0: i32, %arg1: i32) -> (i32, i32) {
    %c0_i32 = arith.constant 0 : i32
    %c0_i32_0 = arith.constant 0 : i32
    return %arg0, %c0_i32 : i32, i32
  }
  func.func @transform_1(%arg0: i32, %arg1: i32) -> (i32, i32) {
    %c0_i32 = arith.constant 0 : i32
    %c0_i32_0 = arith.constant 0 : i32
    return %c0_i32, %arg1 : i32, i32
  }
  func.func @transform_2(%arg0: i32, %arg1: i32) -> (i32, i32) {
    %c0_i32 = arith.constant 0 : i32
    %c0_i32_0 = arith.constant 0 : i32
    return %c0_i32, %arg1 : i32, i32
  }
  func.func @transform_3(%arg0: i32, %arg1: i32) -> (i32, i32) {
    %c0_i32 = arith.constant 0 : i32
    return %arg0, %arg1 : i32, i32
  }
}

module attributes {stable_mosaic.version = 11 : i64} {
  func.func @_lstm_chunk_kernel(%arg0: i32, %arg1: memref<8x8x512xf32, #tpu.memory_space<vmem>>, %arg2: memref<128x512xbf16, #tpu.memory_space<vmem>>, %arg3: memref<8x128xf32, #tpu.memory_space<vmem>>, %arg4: memref<8x128xf32, #tpu.memory_space<vmem>>, %arg5: memref<8x8x128xbf16, #tpu.memory_space<vmem>>, %arg6: memref<8x128xf32, #tpu.memory_space<vmem>>, %arg7: memref<8x128xf32, #tpu.memory_space<vmem>>, %arg8: memref<8x128xf32, #tpu.memory_space<vmem>>, %arg9: memref<8x128xf32, #tpu.memory_space<vmem>>) attributes {dimension_semantics = [#tpu.dimension_semantics<arbitrary>], iteration_bounds = array<i64: 1>, scalar_prefetch = 0 : i64, scratch_operands = 2 : i64, tpu.core_type = #tpu.core_type<tc>, window_params = [{transform_indices = @transform_0, window_bounds = array<i64: 8, 8, 512>}, {pipeline_mode = #tpu.pipeline_mode<synchronous>, transform_indices = @transform_1, window_bounds = array<i64: 128, 512>}, {pipeline_mode = #tpu.pipeline_mode<synchronous>, transform_indices = @transform_2, window_bounds = array<i64: 8, 128>}, {pipeline_mode = #tpu.pipeline_mode<synchronous>, transform_indices = @transform_3, window_bounds = array<i64: 8, 128>}, {transform_indices = @transform_4, window_bounds = array<i64: 8, 8, 128>}, {pipeline_mode = #tpu.pipeline_mode<synchronous>, transform_indices = @transform_5, window_bounds = array<i64: 8, 128>}, {pipeline_mode = #tpu.pipeline_mode<synchronous>, transform_indices = @transform_6, window_bounds = array<i64: 8, 128>}]} {
    %c0_i32 = arith.constant 0 : i32
    %0 = arith.cmpi eq, %arg0, %c0_i32 : i32
    %1 = arith.extui %0 : i1 to i32
    %c0_i32_0 = arith.constant 0 : i32
    %2 = arith.cmpi ne, %1, %c0_i32_0 : i32
    scf.if %2 {
      %c0 = arith.constant 0 : index
      %c0_7 = arith.constant 0 : index
      %11 = vector.load %arg3[%c0, %c0_7] : memref<8x128xf32, #tpu.memory_space<vmem>>, vector<8x128xf32>
      %c0_8 = arith.constant 0 : index
      %c0_9 = arith.constant 0 : index
      %12 = vector.load %arg8[%c0_8, %c0_9] : memref<8x128xf32, #tpu.memory_space<vmem>>, vector<8x128xf32>
      tpu.vector_store %arg8[%c0_8, %c0_9], %11 {strides = array<i32>} : memref<8x128xf32, #tpu.memory_space<vmem>>, vector<8x128xf32>,
      %c0_10 = arith.constant 0 : index
      %c0_11 = arith.constant 0 : index
      %13 = vector.load %arg4[%c0_10, %c0_11] : memref<8x128xf32, #tpu.memory_space<vmem>>, vector<8x128xf32>
      %c0_12 = arith.constant 0 : index
      %c0_13 = arith.constant 0 : index
      %14 = vector.load %arg9[%c0_12, %c0_13] : memref<8x128xf32, #tpu.memory_space<vmem>>, vector<8x128xf32>
      tpu.vector_store %arg9[%c0_12, %c0_13], %13 {strides = array<i32>} : memref<8x128xf32, #tpu.memory_space<vmem>>, vector<8x128xf32>,
    } else {
    }
    %c8_i32 = arith.constant 8 : i32
    %3 = arith.muli %arg0, %c8_i32 : i32
    %c8_i32_1 = arith.constant 8 : i32
    %4 = arith.subi %c8_i32_1, %3 : i32
    %c8_i32_2 = arith.constant 8 : i32
    %5 = arith.minsi %c8_i32_2, %4 : i32
    %c0_i32_3 = arith.constant 0 : i32
    %c0_i32_4 = arith.constant 0 : i32
    %6 = arith.subi %5, %c0_i32_4 : i32
    %7 = arith.addi %c0_i32_4, %6 : i32
    %c1_i32 = arith.constant 1 : i32
    scf.for %arg10 = %c0_i32_4 to %7 step %c1_i32  : i32 {
      %11 = arith.index_cast %arg10 : i32 to index
      %c0 = arith.constant 0 : index
      %c0_7 = arith.constant 0 : index
      %12 = vector.load %arg1[%11, %c0, %c0_7] : memref<8x8x512xf32, #tpu.memory_space<vmem>>, vector<1x8x512xf32>
      %13 = vector.shape_cast %12 : vector<1x8x512xf32> to vector<8x512xf32>
      %c0_8 = arith.constant 0 : index
      %c0_9 = arith.constant 0 : index
      %14 = vector.load %arg8[%c0_8, %c0_9] : memref<8x128xf32, #tpu.memory_space<vmem>>, vector<8x128xf32>
      %15 = arith.truncf %14 : vector<8x128xf32> to vector<8x128xbf16>
      %c0_10 = arith.constant 0 : index
      %c0_11 = arith.constant 0 : index
      %16 = vector.load %arg2[%c0_10, %c0_11] : memref<128x512xbf16, #tpu.memory_space<vmem>>, vector<128x512xbf16>
      %cst = arith.constant dense<0.000000e+00> : vector<8x512xf32>
      %17 = tpu.matmul %15, %16, %cst {dimension_numbers = #tpu.dot_dimension_numbers<[1], [0], [0], [1], [0, 0, 1, 1], [], []>} : vector<8x128xbf16>, vector<128x512xbf16>, vector<8x512xf32> -> vector<8x512xf32>
      %18 = arith.addf %13, %17 : vector<8x512xf32>
      %19 = vector.extract_strided_slice %18 {offsets = [0, 0], sizes = [8, 128], strides = [1, 1]} : vector<8x512xf32> to vector<8x128xf32>
      %20 = arith.negf %19 : vector<8x128xf32>
      %21 = math.exp %20 : vector<8x128xf32>
      %cst_12 = arith.constant 1.000000e+00 : f32
      %22 = vector.broadcast %cst_12 : f32 to vector<8x128xf32>
      %23 = arith.addf %22, %21 : vector<8x128xf32>
      %24 = arith.divf %22, %23 : vector<8x128xf32>
      %25 = vector.extract_strided_slice %18 {offsets = [0, 128], sizes = [8, 128], strides = [1, 1]} : vector<8x512xf32> to vector<8x128xf32>
      %26 = arith.negf %25 : vector<8x128xf32>
      %27 = math.exp %26 : vector<8x128xf32>
      %cst_13 = arith.constant 1.000000e+00 : f32
      %28 = vector.broadcast %cst_13 : f32 to vector<8x128xf32>
      %29 = arith.addf %28, %27 : vector<8x128xf32>
      %30 = arith.divf %28, %29 : vector<8x128xf32>
      %31 = vector.extract_strided_slice %18 {offsets = [0, 256], sizes = [8, 128], strides = [1, 1]} : vector<8x512xf32> to vector<8x128xf32>
      %32 = math.tanh %31 : vector<8x128xf32>
      %33 = vector.extract_strided_slice %18 {offsets = [0, 384], sizes = [8, 128], strides = [1, 1]} : vector<8x512xf32> to vector<8x128xf32>
      %34 = arith.negf %33 : vector<8x128xf32>
      %35 = math.exp %34 : vector<8x128xf32>
      %cst_14 = arith.constant 1.000000e+00 : f32
      %36 = vector.broadcast %cst_14 : f32 to vector<8x128xf32>
      %37 = arith.addf %36, %35 : vector<8x128xf32>
      %38 = arith.divf %36, %37 : vector<8x128xf32>
      %c0_15 = arith.constant 0 : index
      %c0_16 = arith.constant 0 : index
      %39 = vector.load %arg9[%c0_15, %c0_16] : memref<8x128xf32, #tpu.memory_space<vmem>>, vector<8x128xf32>
      %40 = arith.mulf %30, %39 : vector<8x128xf32>
      %41 = arith.mulf %24, %32 : vector<8x128xf32>
      %42 = arith.addf %40, %41 : vector<8x128xf32>
      %43 = math.tanh %42 : vector<8x128xf32>
      %44 = arith.mulf %38, %43 : vector<8x128xf32>
      %c0_17 = arith.constant 0 : index
      %c0_18 = arith.constant 0 : index
      %45 = vector.load %arg9[%c0_17, %c0_18] : memref<8x128xf32, #tpu.memory_space<vmem>>, vector<8x128xf32>
      tpu.vector_store %arg9[%c0_17, %c0_18], %42 {strides = array<i32>} : memref<8x128xf32, #tpu.memory_space<vmem>>, vector<8x128xf32>,
      %c0_19 = arith.constant 0 : index
      %c0_20 = arith.constant 0 : index
      %46 = vector.load %arg8[%c0_19, %c0_20] : memref<8x128xf32, #tpu.memory_space<vmem>>, vector<8x128xf32>
      tpu.vector_store %arg8[%c0_19, %c0_20], %44 {strides = array<i32>} : memref<8x128xf32, #tpu.memory_space<vmem>>, vector<8x128xf32>,
      %47 = arith.truncf %44 : vector<8x128xf32> to vector<8x128xbf16>
      %48 = arith.index_cast %arg10 : i32 to index
      %c0_21 = arith.constant 0 : index
      %c0_22 = arith.constant 0 : index
      %49 = vector.load %arg5[%48, %c0_21, %c0_22] : memref<8x8x128xbf16, #tpu.memory_space<vmem>>, vector<1x8x128xbf16>
      %50 = vector.shape_cast %49 : vector<1x8x128xbf16> to vector<8x128xbf16>
      %51 = vector.shape_cast %47 : vector<8x128xbf16> to vector<1x8x128xbf16>
      tpu.vector_store %arg5[%48, %c0_21, %c0_22], %51 {strides = array<i32>} : memref<8x8x128xbf16, #tpu.memory_space<vmem>>, vector<1x8x128xbf16>,
    }
    %c0_i32_5 = arith.constant 0 : i32
    %8 = arith.cmpi eq, %arg0, %c0_i32_5 : i32
    %9 = arith.extui %8 : i1 to i32
    %c0_i32_6 = arith.constant 0 : i32
    %10 = arith.cmpi ne, %9, %c0_i32_6 : i32
    scf.if %10 {
      %c0 = arith.constant 0 : index
      %c0_7 = arith.constant 0 : index
      %11 = vector.load %arg8[%c0, %c0_7] : memref<8x128xf32, #tpu.memory_space<vmem>>, vector<8x128xf32>
      %c0_8 = arith.constant 0 : index
      %c0_9 = arith.constant 0 : index
      %12 = vector.load %arg6[%c0_8, %c0_9] : memref<8x128xf32, #tpu.memory_space<vmem>>, vector<8x128xf32>
      tpu.vector_store %arg6[%c0_8, %c0_9], %11 {strides = array<i32>} : memref<8x128xf32, #tpu.memory_space<vmem>>, vector<8x128xf32>,
      %c0_10 = arith.constant 0 : index
      %c0_11 = arith.constant 0 : index
      %13 = vector.load %arg9[%c0_10, %c0_11] : memref<8x128xf32, #tpu.memory_space<vmem>>, vector<8x128xf32>
      %c0_12 = arith.constant 0 : index
      %c0_13 = arith.constant 0 : index
      %14 = vector.load %arg7[%c0_12, %c0_13] : memref<8x128xf32, #tpu.memory_space<vmem>>, vector<8x128xf32>
      tpu.vector_store %arg7[%c0_12, %c0_13], %13 {strides = array<i32>} : memref<8x128xf32, #tpu.memory_space<vmem>>, vector<8x128xf32>,
    } else {
    }
    return
  }
  func.func @transform_0(%arg0: i32) -> (i32, i32, i32) {
    %c0_i32 = arith.constant 0 : i32
    %c0_i32_0 = arith.constant 0 : i32
    %c0_i32_1 = arith.constant 0 : i32
    return %arg0, %c0_i32, %c0_i32_0 : i32, i32, i32
  }
  func.func @transform_1(%arg0: i32) -> (i32, i32) {
    %c0_i32 = arith.constant 0 : i32
    %c0_i32_0 = arith.constant 0 : i32
    %c0_i32_1 = arith.constant 0 : i32
    return %c0_i32, %c0_i32_0 : i32, i32
  }
  func.func @transform_2(%arg0: i32) -> (i32, i32) {
    %c0_i32 = arith.constant 0 : i32
    %c0_i32_0 = arith.constant 0 : i32
    %c0_i32_1 = arith.constant 0 : i32
    return %c0_i32, %c0_i32_0 : i32, i32
  }
  func.func @transform_3(%arg0: i32) -> (i32, i32) {
    %c0_i32 = arith.constant 0 : i32
    %c0_i32_0 = arith.constant 0 : i32
    %c0_i32_1 = arith.constant 0 : i32
    return %c0_i32, %c0_i32_0 : i32, i32
  }
  func.func @transform_4(%arg0: i32) -> (i32, i32, i32) {
    %c0_i32 = arith.constant 0 : i32
    %c0_i32_0 = arith.constant 0 : i32
    %c0_i32_1 = arith.constant 0 : i32
    return %arg0, %c0_i32, %c0_i32_0 : i32, i32, i32
  }
  func.func @transform_5(%arg0: i32) -> (i32, i32) {
    %c0_i32 = arith.constant 0 : i32
    %c0_i32_0 = arith.constant 0 : i32
    %c0_i32_1 = arith.constant 0 : i32
    return %c0_i32, %c0_i32_0 : i32, i32
  }
  func.func @transform_6(%arg0: i32) -> (i32, i32) {
    %c0_i32 = arith.constant 0 : i32
    %c0_i32_0 = arith.constant 0 : i32
    %c0_i32_1 = arith.constant 0 : i32
    return %c0_i32, %c0_i32_0 : i32, i32
  }
}

</mosaic_0001>

<llo_original>
// kernel: rnn_language_model_forward.9
$region0: #{rnn_language_model_forward.9}
  #allocation0 [shape = 'u32[]', space=smem, size = 0x4, offset = 0x4, fixed_abs, tag = 'smem constant byte address 0x4 - core index']
  #allocation1 [shape = 'u32[144,128]{1,0:T(1,128)}', space=vmem, size = 0x12000, scoped, tag = 'internal scratch']
  %s0 = inlined_call_operand.vmem [shape: bf16[64,128], index: 0, kind: input, shape index: {}]
  %s1 = inlined_call_operand.vmem [shape: bf16[128,256], index: 1, kind: input, shape index: {}]
  %s2 = inlined_call_operand.vmem [shape: f32[1,256], index: 2, kind: input, shape index: {}]
  %s3 = inlined_call_operand.hbm [shape: f32[64,256], index: 3, kind: output, shape index: {}]
  %s4 = sld [smem:[#allocation0]]
  $region22: #{rnn_language_model_forward.9} parent=0
    _
  %s6 = ssub.s32 1, %s4
  %s7 = scalar_select 0, %s6, %s4
  $region1: #{rnn_language_model_forward.9} parent=0
    #allocation2 [shape = 'u8[65536]{0}', space=vmem, size = 0x10000, scoped, tag = 'output window, operand 0, single buffered']
    #allocation3 [shape = 's32[1]{0}', space=sflag, size = 0x4, scoped, tag = 'scoped memory for rnn_language_model_forward.9']
    %8 = vsyncpa [#allocation3], 0
    // Predicated region
    $region2: #{rnn_language_model_forward.9} parent=1 // pred_check
      _
    $region3: #{rnn_language_model_forward.9} parent=1 // pred_check_branch
      %10 = sbr.rel (0) target = $region5
    $region4: #{rnn_language_model_forward.9} parent=1 // pred_region
      _
    $region5: #{rnn_language_model_forward.9} parent=1 // pred_fallthru
      _
    // Predicated region
    $region6: #{rnn_language_model_forward.9} parent=1 // pred_check
      _
    $region7: #{rnn_language_model_forward.9} parent=1 // pred_check_branch
      %12 = sbr.rel (0) target = $region9
    $region8: #{rnn_language_model_forward.9} parent=1 // pred_region
      _
    $region9: #{rnn_language_model_forward.9} parent=1 // pred_fallthru
      _
    // Predicated region
    $region10: #{rnn_language_model_forward.9} parent=1 // pred_check
      _
    $region11: #{rnn_language_model_forward.9} parent=1 // pred_check_branch
      %14 = sbr.rel (0) target = $region13
    $region12: #{rnn_language_model_forward.9} parent=1 // pred_region
      _
    $region13: #{rnn_language_model_forward.9} parent=1 // pred_fallthru
      _
    %v16 = vld [vmem:[%s0] sm:$0xf]
    %v17 = vld [vmem:[%s0 + $0x4] sm:$0xf]
    %v18 = vld [vmem:[%s0 + $0x8] sm:$0xf]
    %v19 = vld [vmem:[%s0 + $0xc] sm:$0xf]
    %v20 = vld [vmem:[%s0 + $0x10] sm:$0xf]
    %v21 = vld [vmem:[%s0 + $0x14] sm:$0xf]
    %v22 = vld [vmem:[%s0 + $0x18] sm:$0xf]
    %v23 = vld [vmem:[%s0 + $0x1c] sm:$0xf]
    %v24 = vld [vmem:[%s1] sm:$0xff]
    %v25 = vld [vmem:[%s1 + $0x8] sm:$0xff]
    %v26 = vld [vmem:[%s1 + $0x10] sm:$0xff]
    %v27 = vld [vmem:[%s1 + $0x18] sm:$0xff]
    %v28 = vld [vmem:[%s1 + $0x20] sm:$0xff]
    %v29 = vld [vmem:[%s1 + $0x28] sm:$0xff]
    %v30 = vld [vmem:[%s1 + $0x30] sm:$0xff]
    %v31 = vld [vmem:[%s1 + $0x38] sm:$0xff]
    %v32 = vld [vmem:[%s1 + $0x40] sm:$0xff]
    %v33 = vld [vmem:[%s1 + $0x48] sm:$0xff]
    %v34 = vld [vmem:[%s1 + $0x50] sm:$0xff]
    %v35 = vld [vmem:[%s1 + $0x58] sm:$0xff]
    %v36 = vld [vmem:[%s1 + $0x60] sm:$0xff]
    %v37 = vld [vmem:[%s1 + $0x68] sm:$0xff]
    %v38 = vld [vmem:[%s1 + $0x70] sm:$0xff]
    %v39 = vld [vmem:[%s1 + $0x78] sm:$0xff]
    %v40 = vld [vmem:[%s2] sm:$0x3]
    %v42 = vlaneseq
    %v43 = vshrl.u32 %v42, 7
    %v44 = vsub.s32 0, %v43
    %v45 = vrot.slane %v40, %v44
    %v46 = vlaneseq
    %v47 = vshrl.u32 %v46, 7
    %v48 = vsub.s32 1, %v47
    %v49 = vrot.slane %v40, %v48
    %v60 = vunpack.c.l.b16 %v16
    %v61 = vunpack.c.l.b16 %v17
    %v62 = vunpack.c.l.b16 %v18
    %v63 = vunpack.c.l.b16 %v19
    %v64 = vunpack.c.l.b16 %v20
    %v65 = vunpack.c.l.b16 %v21
    %v66 = vunpack.c.l.b16 %v22
    %v67 = vunpack.c.l.b16 %v23
    %v68 = vpack.c.b16 %v61, %v60
    %v69 = vpack.c.b16 %v63, %v62
    %v70 = vpack.c.b16 %v65, %v64
    %v71 = vpack.c.b16 %v67, %v66
    %v92 = vunpack.c.l.b16 %v24
    %v93 = vunpack.c.h.b16 %v24
    %v94 = vunpack.c.l.b16 %v25
    %v95 = vunpack.c.h.b16 %v25
    %v96 = vunpack.c.l.b16 %v26
    %v97 = vunpack.c.h.b16 %v26
    %v98 = vunpack.c.l.b16 %v27
    %v99 = vunpack.c.h.b16 %v27
    %v100 = vunpack.c.l.b16 %v28
    %v101 = vunpack.c.h.b16 %v28
    %v102 = vunpack.c.l.b16 %v29
    %v103 = vunpack.c.h.b16 %v29
    %v104 = vunpack.c.l.b16 %v30
    %v105 = vunpack.c.h.b16 %v30
    %v106 = vunpack.c.l.b16 %v31
    %v107 = vunpack.c.h.b16 %v31
    %v108 = vunpack.c.l.b16 %v32
    %v109 = vunpack.c.h.b16 %v32
    %v110 = vunpack.c.l.b16 %v33
    %v111 = vunpack.c.h.b16 %v33
    %v112 = vunpack.c.l.b16 %v34
    %v113 = vunpack.c.h.b16 %v34
    %v114 = vunpack.c.l.b16 %v35
    %v115 = vunpack.c.h.b16 %v35
    %v116 = vunpack.c.l.b16 %v36
    %v117 = vunpack.c.h.b16 %v36
    %v118 = vunpack.c.l.b16 %v37
    %v119 = vunpack.c.h.b16 %v37
    %v120 = vunpack.c.l.b16 %v38
    %v121 = vunpack.c.h.b16 %v38
    %v122 = vunpack.c.l.b16 %v39
    %v123 = vunpack.c.h.b16 %v39
    %v124 = vpack.c.b16 %v94, %v92
    %v125 = vpack.c.b16 %v95, %v93
    %v126 = vpack.c.b16 %v98, %v96
    %v127 = vpack.c.b16 %v99, %v97
    %v128 = vpack.c.b16 %v102, %v100
    %v129 = vpack.c.b16 %v103, %v101
    %v130 = vpack.c.b16 %v106, %v104
    %v131 = vpack.c.b16 %v107, %v105
    %v132 = vpack.c.b16 %v110, %v108
    %v133 = vpack.c.b16 %v111, %v109
    %v134 = vpack.c.b16 %v114, %v112
    %v135 = vpack.c.b16 %v115, %v113
    %v136 = vpack.c.b16 %v118, %v116
    %v137 = vpack.c.b16 %v119, %v117
    %v138 = vpack.c.b16 %v122, %v120
    %v139 = vpack.c.b16 %v123, %v121
    %156 = vmatprep.subr.bf16.mxu0 %v139
    %157 = vmatpush1.bf16.msra.mxu0 %v138
    %158 = vmatprep.subr.bf16.mxu0 %v137
    %159 = vmatpush1.bf16.msra.mxu0 %v136
    %160 = vmatprep.subr.bf16.mxu0 %v135
    %161 = vmatpush1.bf16.msra.mxu0 %v134
    %162 = vmatprep.subr.bf16.mxu0 %v133
    %163 = vmatpush1.bf16.msra.mxu0 %v132
    %164 = vmatprep.subr.bf16.mxu0 %v131
    %165 = vmatpush1.bf16.msra.mxu0 %v130
    %166 = vmatprep.subr.bf16.mxu0 %v129
    %167 = vmatpush1.bf16.msra.mxu0 %v128
    %168 = vmatprep.subr.bf16.mxu0 %v127
    %169 = vmatpush1.bf16.msra.mxu0 %v126
    %170 = vmatprep.subr.bf16.mxu0 %v125
    %171 = vmatpush1.bf16.msra.mxu0 %v124
    %172 = vmatprep.subr.bf16.mxu0 0
    %173 = vmatpush2.bf16.msra.mxu0 0
    %174 = vmatprep.subr.bf16.mxu0 0
    %175 = vmatpush2.bf16.msra.mxu0 0
    %176 = vmatprep.subr.bf16.mxu0 0
    %177 = vmatpush2.bf16.msra.mxu0 0
    %178 = vmatprep.subr.bf16.mxu0 0
    %179 = vmatpush2.bf16.msra.mxu0 0
    %180 = vmatprep.subr.bf16.mxu0 0
    %181 = vmatpush2.bf16.msra.mxu0 0
    %182 = vmatprep.subr.bf16.mxu0 0
    %183 = vmatpush2.bf16.msra.mxu0 0
    %184 = vmatprep.subr.bf16.mxu0 0
    %185 = vmatpush2.bf16.msra.mxu0 0
    %186 = vmatprep.subr.bf16.mxu0 0
    %187 = vmatpush2.bf16.msra.mxu0 0
    %188 = vmatprep.mubr.bf16.mxu0 0
    %189 = vmatmul.mubr.bf16.gmra.mxu0 %v68
    %v190 = vpop.f32.mrf.mxu0
    %v191 = vadd.f32 %v45, %v190
    %v192 = vpop.f32.mrf.mxu0
    %v193 = vadd.f32 %v49, %v192
    %v194 = vpop.f32.mrf.mxu0
    %v195 = vadd.f32 %v45, %v194
    %v196 = vpop.f32.mrf.mxu0
    %v197 = vadd.f32 %v49, %v196
    %198 = vmatprep.mubr.bf16.mxu0 0
    %199 = vmatmul.mubr.bf16.gmra.mxu0 %v69
    %v200 = vpop.f32.mrf.mxu0
    %v201 = vadd.f32 %v45, %v200
    %v202 = vpop.f32.mrf.mxu0
    %v203 = vadd.f32 %v49, %v202
    %v204 = vpop.f32.mrf.mxu0
    %v205 = vadd.f32 %v45, %v204
    %v206 = vpop.f32.mrf.mxu0
    %v207 = vadd.f32 %v49, %v206
    %208 = vmatprep.mubr.bf16.mxu0 0
    %209 = vmatmul.mubr.bf16.gmra.mxu0 %v70
    %v210 = vpop.f32.mrf.mxu0
    %v211 = vadd.f32 %v45, %v210
    %v212 = vpop.f32.mrf.mxu0
    %v213 = vadd.f32 %v49, %v212
    %v214 = vpop.f32.mrf.mxu0
    %v215 = vadd.f32 %v45, %v214
    %v216 = vpop.f32.mrf.mxu0
    %v217 = vadd.f32 %v49, %v216
    %218 = vmatprep.mubr.bf16.mxu0 0
    %219 = vmatmul.mubr.bf16.gmra.mxu0 %v71
    %v220 = vpop.f32.mrf.mxu0
    %v221 = vadd.f32 %v45, %v220
    %v222 = vpop.f32.mrf.mxu0
    %v223 = vadd.f32 %v49, %v222
    %v224 = vpop.f32.mrf.mxu0
    %v225 = vadd.f32 %v45, %v224
    %v226 = vpop.f32.mrf.mxu0
    %v227 = vadd.f32 %v49, %v226
    %228 = vdwg.mxu0
    %229 = vst [vmem:[#allocation2] sm:$0xff] %v191
    %230 = vst [vmem:[#allocation2 + $0x8] sm:$0xff] %v193
    %231 = vst [vmem:[#allocation2 + $0x10] sm:$0xff] %v195
    %232 = vst [vmem:[#allocation2 + $0x18] sm:$0xff] %v197
    %233 = vst [vmem:[#allocation2 + $0x20] sm:$0xff] %v201
    %234 = vst [vmem:[#allocation2 + $0x28] sm:$0xff] %v203
    %235 = vst [vmem:[#allocation2 + $0x30] sm:$0xff] %v205
    %236 = vst [vmem:[#allocation2 + $0x38] sm:$0xff] %v207
    %237 = vst [vmem:[#allocation2 + $0x40] sm:$0xff] %v211
    %238 = vst [vmem:[#allocation2 + $0x48] sm:$0xff] %v213
    %239 = vst [vmem:[#allocation2 + $0x50] sm:$0xff] %v215
    %240 = vst [vmem:[#allocation2 + $0x58] sm:$0xff] %v217
    %241 = vst [vmem:[#allocation2 + $0x60] sm:$0xff] %v221
    %242 = vst [vmem:[#allocation2 + $0x68] sm:$0xff] %v223
    %243 = vst [vmem:[#allocation2 + $0x70] sm:$0xff] %v225
    %244 = vst [vmem:[#allocation2 + $0x78] sm:$0xff] %v227
    // Predicated region
    $region14: #{rnn_language_model_forward.9} parent=1 // pred_check
      _
    $region15: #{rnn_language_model_forward.9} parent=1 // pred_check_branch
      %246 = sbr.rel (0) target = $region17
    $region16: #{rnn_language_model_forward.9} parent=1 // pred_region
      %s248 = ssub.s32 2048, 2048
      %249 = vsyncadd [#allocation3], %s248
      %s250 = sshll.u32 [#allocation2], 4
      %s251 = int_to_ptr.vmem [resolvable:$true] %s250
      %256 = dma.vmem_to_hbm [thread:$0]  %s251, 2048, %s3, [#allocation3], 256, 256, 16
    $region17: #{rnn_language_model_forward.9} parent=1 // pred_fallthru
      _
    // Predicated region
    $region18: #{rnn_language_model_forward.9} parent=1 // pred_check
      _
    $region19: #{rnn_language_model_forward.9} parent=1 // pred_check_branch
      %258 = sbr.rel (0) target = $region21
    $region20: #{rnn_language_model_forward.9} parent=1 // pred_region
      %259 = dma.done [#allocation3], 2048
    $region21: #{rnn_language_model_forward.9} parent=1 // pred_fallthru
      _
    %260 = vsyncpa [#allocation3], 1

// kernel: rnn_language_model_forward.5
$region0: #{rnn_language_model_forward.5}
  #allocation0 [shape = 'u32[]', space=smem, size = 0x4, offset = 0x4, fixed_abs, tag = 'smem constant byte address 0x4 - core index']
  #allocation1 [shape = 'u32[144,128]{1,0:T(1,128)}', space=vmem, size = 0x12000, scoped, tag = 'internal scratch']
  %s0 = inlined_call_operand.vmem [shape: bf16[64,128], index: 0, kind: input, shape index: {}]
  %s1 = inlined_call_operand.vmem [shape: bf16[128,512], index: 1, kind: input, shape index: {}]
  %s2 = inlined_call_operand.vmem [shape: f32[1,512], index: 2, kind: input, shape index: {}]
  %s3 = inlined_call_operand.vmem [shape: f32[64,512], index: 3, kind: output, shape index: {}]
  %s4 = sld [smem:[#allocation0]]
  $region22: #{rnn_language_model_forward.5} parent=0
    _
  %s6 = ssub.s32 1, %s4
  %s7 = scalar_select 0, %s6, %s4
  // Predicated region
  $region2: #{rnn_language_model_forward.5} parent=0 // pred_check
    _
  $region3: #{rnn_language_model_forward.5} parent=0 // pred_check_branch
    %9 = sbr.rel (0) target = $region5
  $region4: #{rnn_language_model_forward.5} parent=0 // pred_region
    _
  $region5: #{rnn_language_model_forward.5} parent=0 // pred_fallthru
    _
  // Predicated region
  $region6: #{rnn_language_model_forward.5} parent=0 // pred_check
    _
  $region7: #{rnn_language_model_forward.5} parent=0 // pred_check_branch
    %11 = sbr.rel (0) target = $region9
  $region8: #{rnn_language_model_forward.5} parent=0 // pred_region
    _
  $region9: #{rnn_language_model_forward.5} parent=0 // pred_fallthru
    _
  // Predicated region
  $region10: #{rnn_language_model_forward.5} parent=0 // pred_check
    _
  $region11: #{rnn_language_model_forward.5} parent=0 // pred_check_branch
    %13 = sbr.rel (0) target = $region13
  $region12: #{rnn_language_model_forward.5} parent=0 // pred_region
    _
  $region13: #{rnn_language_model_forward.5} parent=0 // pred_fallthru
    _
  %v15 = vld [vmem:[%s0] sm:$0xf]
  %v16 = vld [vmem:[%s0 + $0x4] sm:$0xf]
  %v17 = vld [vmem:[%s0 + $0x8] sm:$0xf]
  %v18 = vld [vmem:[%s0 + $0xc] sm:$0xf]
  %v19 = vld [vmem:[%s0 + $0x10] sm:$0xf]
  %v20 = vld [vmem:[%s0 + $0x14] sm:$0xf]
  %v21 = vld [vmem:[%s0 + $0x18] sm:$0xf]
  %v22 = vld [vmem:[%s0 + $0x1c] sm:$0xf]
  %v23 = vld [vmem:[%s1] sm:$0xff]
  %v24 = vld [vmem:[%s1 + $0x8] sm:$0xff]
  %v25 = vld [vmem:[%s1 + $0x10] sm:$0xff]
  %v26 = vld [vmem:[%s1 + $0x18] sm:$0xff]
  %v27 = vld [vmem:[%s1 + $0x20] sm:$0xff]
  %v28 = vld [vmem:[%s1 + $0x28] sm:$0xff]
  %v29 = vld [vmem:[%s1 + $0x30] sm:$0xff]
  %v30 = vld [vmem:[%s1 + $0x38] sm:$0xff]
  %v31 = vld [vmem:[%s1 + $0x40] sm:$0xff]
  %v32 = vld [vmem:[%s1 + $0x48] sm:$0xff]
  %v33 = vld [vmem:[%s1 + $0x50] sm:$0xff]
  %v34 = vld [vmem:[%s1 + $0x58] sm:$0xff]
  %v35 = vld [vmem:[%s1 + $0x60] sm:$0xff]
  %v36 = vld [vmem:[%s1 + $0x68] sm:$0xff]
  %v37 = vld [vmem:[%s1 + $0x70] sm:$0xff]
  %v38 = vld [vmem:[%s1 + $0x78] sm:$0xff]
  %v39 = vld [vmem:[%s1 + $0x80] sm:$0xff]
  %v40 = vld [vmem:[%s1 + $0x88] sm:$0xff]
  %v41 = vld [vmem:[%s1 + $0x90] sm:$0xff]
  %v42 = vld [vmem:[%s1 + $0x98] sm:$0xff]
  %v43 = vld [vmem:[%s1 + $0xa0] sm:$0xff]
  %v44 = vld [vmem:[%s1 + $0xa8] sm:$0xff]
  %v45 = vld [vmem:[%s1 + $0xb0] sm:$0xff]
  %v46 = vld [vmem:[%s1 + $0xb8] sm:$0xff]
  %v47 = vld [vmem:[%s1 + $0xc0] sm:$0xff]
  %v48 = vld [vmem:[%s1 + $0xc8] sm:$0xff]
  %v49 = vld [vmem:[%s1 + $0xd0] sm:$0xff]
  %v50 = vld [vmem:[%s1 + $0xd8] sm:$0xff]
  %v51 = vld [vmem:[%s1 + $0xe0] sm:$0xff]
  %v52 = vld [vmem:[%s1 + $0xe8] sm:$0xff]
  %v53 = vld [vmem:[%s1 + $0xf0] sm:$0xff]
  %v54 = vld [vmem:[%s1 + $0xf8] sm:$0xff]
  %v55 = vld [vmem:[%s2] sm:$0xf]
  %v57 = vlaneseq
  %v58 = vshrl.u32 %v57, 7
  %v59 = vsub.s32 0, %v58
  %v60 = vrot.slane %v55, %v59
  %v61 = vlaneseq
  %v62 = vshrl.u32 %v61, 7
  %v63 = vsub.s32 1, %v62
  %v64 = vrot.slane %v55, %v63
  %v65 = vlaneseq
  %v66 = vshrl.u32 %v65, 7
  %v67 = vsub.s32 2, %v66
  %v68 = vrot.slane %v55, %v67
  %v69 = vlaneseq
  %v70 = vshrl.u32 %v69, 7
  %v71 = vsub.s32 3, %v70
  %v72 = vrot.slane %v55, %v71
  %v85 = vunpack.c.l.b16 %v15
  %v86 = vunpack.c.l.b16 %v16
  %v87 = vunpack.c.l.b16 %v17
  %v88 = vunpack.c.l.b16 %v18
  %v89 = vunpack.c.l.b16 %v19
  %v90 = vunpack.c.l.b16 %v20
  %v91 = vunpack.c.l.b16 %v21
  %v92 = vunpack.c.l.b16 %v22
  %v93 = vpack.c.b16 %v86, %v85
  %v94 = vpack.c.b16 %v88, %v87
  %v95 = vpack.c.b16 %v90, %v89
  %v96 = vpack.c.b16 %v92, %v91
  %v133 = vunpack.c.l.b16 %v23
  %v134 = vunpack.c.h.b16 %v23
  %v135 = vunpack.c.l.b16 %v24
  %v136 = vunpack.c.h.b16 %v24
  %v137 = vunpack.c.l.b16 %v25
  %v138 = vunpack.c.h.b16 %v25
  %v139 = vunpack.c.l.b16 %v26
  %v140 = vunpack.c.h.b16 %v26
  %v141 = vunpack.c.l.b16 %v27
  %v142 = vunpack.c.h.b16 %v27
  %v143 = vunpack.c.l.b16 %v28
  %v144 = vunpack.c.h.b16 %v28
  %v145 = vunpack.c.l.b16 %v29
  %v146 = vunpack.c.h.b16 %v29
  %v147 = vunpack.c.l.b16 %v30
  %v148 = vunpack.c.h.b16 %v30
  %v149 = vunpack.c.l.b16 %v31
  %v150 = vunpack.c.h.b16 %v31
  %v151 = vunpack.c.l.b16 %v32
  %v152 = vunpack.c.h.b16 %v32
  %v153 = vunpack.c.l.b16 %v33
  %v154 = vunpack.c.h.b16 %v33
  %v155 = vunpack.c.l.b16 %v34
  %v156 = vunpack.c.h.b16 %v34
  %v157 = vunpack.c.l.b16 %v35
  %v158 = vunpack.c.h.b16 %v35
  %v159 = vunpack.c.l.b16 %v36
  %v160 = vunpack.c.h.b16 %v36
  %v161 = vunpack.c.l.b16 %v37
  %v162 = vunpack.c.h.b16 %v37
  %v163 = vunpack.c.l.b16 %v38
  %v164 = vunpack.c.h.b16 %v38
  %v165 = vunpack.c.l.b16 %v39
  %v166 = vunpack.c.h.b16 %v39
  %v167 = vunpack.c.l.b16 %v40
  %v168 = vunpack.c.h.b16 %v40
  %v169 = vunpack.c.l.b16 %v41
  %v170 = vunpack.c.h.b16 %v41
  %v171 = vunpack.c.l.b16 %v42
  %v172 = vunpack.c.h.b16 %v42
  %v173 = vunpack.c.l.b16 %v43
  %v174 = vunpack.c.h.b16 %v43
  %v175 = vunpack.c.l.b16 %v44
  %v176 = vunpack.c.h.b16 %v44
  %v177 = vunpack.c.l.b16 %v45
  %v178 = vunpack.c.h.b16 %v45
  %v179 = vunpack.c.l.b16 %v46
  %v180 = vunpack.c.h.b16 %v46
  %v181 = vunpack.c.l.b16 %v47
  %v182 = vunpack.c.h.b16 %v47
  %v183 = vunpack.c.l.b16 %v48
  %v184 = vunpack.c.h.b16 %v48
  %v185 = vunpack.c.l.b16 %v49
  %v186 = vunpack.c.h.b16 %v49
  %v187 = vunpack.c.l.b16 %v50
  %v188 = vunpack.c.h.b16 %v50
  %v189 = vunpack.c.l.b16 %v51
  %v190 = vunpack.c.h.b16 %v51
  %v191 = vunpack.c.l.b16 %v52
  %v192 = vunpack.c.h.b16 %v52
  %v193 = vunpack.c.l.b16 %v53
  %v194 = vunpack.c.h.b16 %v53
  %v195 = vunpack.c.l.b16 %v54
  %v196 = vunpack.c.h.b16 %v54
  %v197 = vpack.c.b16 %v137, %v133
  %v198 = vpack.c.b16 %v138, %v134
  %v199 = vpack.c.b16 %v139, %v135
  %v200 = vpack.c.b16 %v140, %v136
  %v201 = vpack.c.b16 %v145, %v141
  %v202 = vpack.c.b16 %v146, %v142
  %v203 = vpack.c.b16 %v147, %v143
  %v204 = vpack.c.b16 %v148, %v144
  %v205 = vpack.c.b16 %v153, %v149
  %v206 = vpack.c.b16 %v154, %v150
  %v207 = vpack.c.b16 %v155, %v151
  %v208 = vpack.c.b16 %v156, %v152
  %v209 = vpack.c.b16 %v161, %v157
  %v210 = vpack.c.b16 %v162, %v158
  %v211 = vpack.c.b16 %v163, %v159
  %v212 = vpack.c.b16 %v164, %v160
  %v213 = vpack.c.b16 %v169, %v165
  %v214 = vpack.c.b16 %v170, %v166
  %v215 = vpack.c.b16 %v171, %v167
  %v216 = vpack.c.b16 %v172, %v168
  %v217 = vpack.c.b16 %v177, %v173
  %v218 = vpack.c.b16 %v178, %v174
  %v219 = vpack.c.b16 %v179, %v175
  %v220 = vpack.c.b16 %v180, %v176
  %v221 = vpack.c.b16 %v185, %v181
  %v222 = vpack.c.b16 %v186, %v182
  %v223 = vpack.c.b16 %v187, %v183
  %v224 = vpack.c.b16 %v188, %v184
  %v225 = vpack.c.b16 %v193, %v189
  %v226 = vpack.c.b16 %v194, %v190
  %v227 = vpack.c.b16 %v195, %v191
  %v228 = vpack.c.b16 %v196, %v192
  %261 = vmatprep.subr.bf16.mxu0 %v226
  %262 = vmatpush1.bf16.msra.mxu0 %v225
  %263 = vmatprep.subr.bf16.mxu0 %v222
  %264 = vmatpush1.bf16.msra.mxu0 %v221
  %265 = vmatprep.subr.bf16.mxu0 %v218
  %266 = vmatpush1.bf16.msra.mxu0 %v217
  %267 = vmatprep.subr.bf16.mxu0 %v214
  %268 = vmatpush1.bf16.msra.mxu0 %v213
  %269 = vmatprep.subr.bf16.mxu0 %v210
  %270 = vmatpush1.bf16.msra.mxu0 %v209
  %271 = vmatprep.subr.bf16.mxu0 %v206
  %272 = vmatpush1.bf16.msra.mxu0 %v205
  %273 = vmatprep.subr.bf16.mxu0 %v202
  %274 = vmatpush1.bf16.msra.mxu0 %v201
  %275 = vmatprep.subr.bf16.mxu0 %v198
  %276 = vmatpush1.bf16.msra.mxu0 %v197
  %277 = vmatprep.subr.bf16.mxu0 0
  %278 = vmatpush2.bf16.msra.mxu0 0
  %279 = vmatprep.subr.bf16.mxu0 0
  %280 = vmatpush2.bf16.msra.mxu0 0
  %281 = vmatprep.subr.bf16.mxu0 0
  %282 = vmatpush2.bf16.msra.mxu0 0
  %283 = vmatprep.subr.bf16.mxu0 0
  %284 = vmatpush2.bf16.msra.mxu0 0
  %285 = vmatprep.subr.bf16.mxu0 0
  %286 = vmatpush2.bf16.msra.mxu0 0
  %287 = vmatprep.subr.bf16.mxu0 0
  %288 = vmatpush2.bf16.msra.mxu0 0
  %289 = vmatprep.subr.bf16.mxu0 0
  %290 = vmatpush2.bf16.msra.mxu0 0
  %291 = vmatprep.subr.bf16.mxu0 0
  %292 = vmatpush2.bf16.msra.mxu0 0
  %293 = vmatprep.mubr.bf16.mxu0 0
  %294 = vmatmul.mubr.bf16.gmra.mxu0 %v93
  %v295 = vpop.f32.mrf.mxu0
  %v296 = vadd.f32 %v60, %v295
  %v297 = vpop.f32.mrf.mxu0
  %v298 = vadd.f32 %v64, %v297
  %v299 = vpop.f32.mrf.mxu0
  %v300 = vadd.f32 %v60, %v299
  %v301 = vpop.f32.mrf.mxu0
  %v302 = vadd.f32 %v64, %v301
  %303 = vmatprep.mubr.bf16.mxu0 0
  %304 = vmatmul.mubr.bf16.gmra.mxu0 %v94
  %v305 = vpop.f32.mrf.mxu0
  %v306 = vadd.f32 %v60, %v305
  %v307 = vpop.f32.mrf.mxu0
  %v308 = vadd.f32 %v64, %v307
  %v309 = vpop.f32.mrf.mxu0
  %v310 = vadd.f32 %v60, %v309
  %v311 = vpop.f32.mrf.mxu0
  %v312 = vadd.f32 %v64, %v311
  %313 = vmatprep.mubr.bf16.mxu0 0
  %314 = vmatmul.mubr.bf16.gmra.mxu0 %v95
  %v315 = vpop.f32.mrf.mxu0
  %v316 = vadd.f32 %v60, %v315
  %v317 = vpop.f32.mrf.mxu0
  %v318 = vadd.f32 %v64, %v317
  %v319 = vpop.f32.mrf.mxu0
  %v320 = vadd.f32 %v60, %v319
  %v321 = vpop.f32.mrf.mxu0
  %v322 = vadd.f32 %v64, %v321
  %323 = vmatprep.mubr.bf16.mxu0 0
  %324 = vmatmul.mubr.bf16.gmra.mxu0 %v96
  %v325 = vpop.f32.mrf.mxu0
  %v326 = vadd.f32 %v60, %v325
  %v327 = vpop.f32.mrf.mxu0
  %v328 = vadd.f32 %v64, %v327
  %v329 = vpop.f32.mrf.mxu0
  %v330 = vadd.f32 %v60, %v329
  %v331 = vpop.f32.mrf.mxu0
  %v332 = vadd.f32 %v64, %v331
  %333 = vdwg.mxu0
  %334 = vmatprep.subr.bf16.mxu0 %v228
  %335 = vmatpush1.bf16.msra.mxu0 %v227
  %336 = vmatprep.subr.bf16.mxu0 %v224
  %337 = vmatpush1.bf16.msra.mxu0 %v223
  %338 = vmatprep.subr.bf16.mxu0 %v220
  %339 = vmatpush1.bf16.msra.mxu0 %v219
  %340 = vmatprep.subr.bf16.mxu0 %v216
  %341 = vmatpush1.bf16.msra.mxu0 %v215
  %342 = vmatprep.subr.bf16.mxu0 %v212
  %343 = vmatpush1.bf16.msra.mxu0 %v211
  %344 = vmatprep.subr.bf16.mxu0 %v208
  %345 = vmatpush1.bf16.msra.mxu0 %v207
  %346 = vmatprep.subr.bf16.mxu0 %v204
  %347 = vmatpush1.bf16.msra.mxu0 %v203
  %348 = vmatprep.subr.bf16.mxu0 %v200
  %349 = vmatpush1.bf16.msra.mxu0 %v199
  %350 = vmatprep.subr.bf16.mxu0 0
  %351 = vmatpush2.bf16.msra.mxu0 0
  %352 = vmatprep.subr.bf16.mxu0 0
  %353 = vmatpush2.bf16.msra.mxu0 0
  %354 = vmatprep.subr.bf16.mxu0 0
  %355 = vmatpush2.bf16.msra.mxu0 0
  %356 = vmatprep.subr.bf16.mxu0 0
  %357 = vmatpush2.bf16.msra.mxu0 0
  %358 = vmatprep.subr.bf16.mxu0 0
  %359 = vmatpush2.bf16.msra.mxu0 0
  %360 = vmatprep.subr.bf16.mxu0 0
  %361 = vmatpush2.bf16.msra.mxu0 0
  %362 = vmatprep.subr.bf16.mxu0 0
  %363 = vmatpush2.bf16.msra.mxu0 0
  %364 = vmatprep.subr.bf16.mxu0 0
  %365 = vmatpush2.bf16.msra.mxu0 0
  %366 = vmatprep.mubr.bf16.mxu0 0
  %367 = vmatmul.mubr.bf16.gmra.mxu0 %v93
  %v368 = vpop.f32.mrf.mxu0
  %v369 = vadd.f32 %v68, %v368
  %v370 = vpop.f32.mrf.mxu0
  %v371 = vadd.f32 %v72, %v370
  %v372 = vpop.f32.mrf.mxu0
  %v373 = vadd.f32 %v68, %v372
  %v374 = vpop.f32.mrf.mxu0
  %v375 = vadd.f32 %v72, %v374
  %376 = vmatprep.mubr.bf16.mxu0 0
  %377 = vmatmul.mubr.bf16.gmra.mxu0 %v94
  %v378 = vpop.f32.mrf.mxu0
  %v379 = vadd.f32 %v68, %v378
  %v380 = vpop.f32.mrf.mxu0
  %v381 = vadd.f32 %v72, %v380
  %v382 = vpop.f32.mrf.mxu0
  %v383 = vadd.f32 %v68, %v382
  %v384 = vpop.f32.mrf.mxu0
  %v385 = vadd.f32 %v72, %v384
  %386 = vmatprep.mubr.bf16.mxu0 0
  %387 = vmatmul.mubr.bf16.gmra.mxu0 %v95
  %v388 = vpop.f32.mrf.mxu0
  %v389 = vadd.f32 %v68, %v388
  %v390 = vpop.f32.mrf.mxu0
  %v391 = vadd.f32 %v72, %v390
  %v392 = vpop.f32.mrf.mxu0
  %v393 = vadd.f32 %v68, %v392
  %v394 = vpop.f32.mrf.mxu0
  %v395 = vadd.f32 %v72, %v394
  %396 = vmatprep.mubr.bf16.mxu0 0
  %397 = vmatmul.mubr.bf16.gmra.mxu0 %v96
  %v398 = vpop.f32.mrf.mxu0
  %v399 = vadd.f32 %v68, %v398
  %v400 = vpop.f32.mrf.mxu0
  %v401 = vadd.f32 %v72, %v400
  %v402 = vpop.f32.mrf.mxu0
  %v403 = vadd.f32 %v68, %v402
  %v404 = vpop.f32.mrf.mxu0
  %v405 = vadd.f32 %v72, %v404
  %406 = vdwg.mxu0
  %407 = vst [vmem:[%s3] sm:$0xff] %v296
  %408 = vst [vmem:[%s3 + $0x8] sm:$0xff] %v298
  %409 = vst [vmem:[%s3 + $0x10] sm:$0xff] %v369
  %410 = vst [vmem:[%s3 + $0x18] sm:$0xff] %v371
  %411 = vst [vmem:[%s3 + $0x20] sm:$0xff] %v300
  %412 = vst [vmem:[%s3 + $0x28] sm:$0xff] %v302
  %413 = vst [vmem:[%s3 + $0x30] sm:$0xff] %v373
  %414 = vst [vmem:[%s3 + $0x38] sm:$0xff] %v375
  %415 = vst [vmem:[%s3 + $0x40] sm:$0xff] %v306
  %416 = vst [vmem:[%s3 + $0x48] sm:$0xff] %v308
  %417 = vst [vmem:[%s3 + $0x50] sm:$0xff] %v379
  %418 = vst [vmem:[%s3 + $0x58] sm:$0xff] %v381
  %419 = vst [vmem:[%s3 + $0x60] sm:$0xff] %v310
  %420 = vst [vmem:[%s3 + $0x68] sm:$0xff] %v312
  %421 = vst [vmem:[%s3 + $0x70] sm:$0xff] %v383
  %422 = vst [vmem:[%s3 + $0x78] sm:$0xff] %v385
  %423 = vst [vmem:[%s3 + $0x80] sm:$0xff] %v316
  %424 = vst [vmem:[%s3 + $0x88] sm:$0xff] %v318
  %425 = vst [vmem:[%s3 + $0x90] sm:$0xff] %v389
  %426 = vst [vmem:[%s3 + $0x98] sm:$0xff] %v391
  %427 = vst [vmem:[%s3 + $0xa0] sm:$0xff] %v320
  %428 = vst [vmem:[%s3 + $0xa8] sm:$0xff] %v322
  %429 = vst [vmem:[%s3 + $0xb0] sm:$0xff] %v393
  %430 = vst [vmem:[%s3 + $0xb8] sm:$0xff] %v395
  %431 = vst [vmem:[%s3 + $0xc0] sm:$0xff] %v326
  %432 = vst [vmem:[%s3 + $0xc8] sm:$0xff] %v328
  %433 = vst [vmem:[%s3 + $0xd0] sm:$0xff] %v399
  %434 = vst [vmem:[%s3 + $0xd8] sm:$0xff] %v401
  %435 = vst [vmem:[%s3 + $0xe0] sm:$0xff] %v330
  %436 = vst [vmem:[%s3 + $0xe8] sm:$0xff] %v332
  %437 = vst [vmem:[%s3 + $0xf0] sm:$0xff] %v403
  %438 = vst [vmem:[%s3 + $0xf8] sm:$0xff] %v405
  // Predicated region
  $region14: #{rnn_language_model_forward.5} parent=0 // pred_check
    _
  $region15: #{rnn_language_model_forward.5} parent=0 // pred_check_branch
    %440 = sbr.rel (0) target = $region17
  $region16: #{rnn_language_model_forward.5} parent=0 // pred_region
    _
  $region17: #{rnn_language_model_forward.5} parent=0 // pred_fallthru
    _
  // Predicated region
  $region18: #{rnn_language_model_forward.5} parent=0 // pred_check
    _
  $region19: #{rnn_language_model_forward.5} parent=0 // pred_check_branch
    %442 = sbr.rel (0) target = $region21
  $region20: #{rnn_language_model_forward.5} parent=0 // pred_region
    _
  $region21: #{rnn_language_model_forward.5} parent=0 // pred_fallthru
    _

// kernel: rnn_language_model_forward.6
$region0: #{rnn_language_model_forward.6}
  #allocation0 [shape = 'u32[]', space=smem, size = 0x4, offset = 0x4, fixed_abs, tag = 'smem constant byte address 0x4 - core index']
  #allocation1 [shape = 'u32[144,128]{1,0:T(1,128)}', space=vmem, size = 0x12000, scoped, tag = 'internal scratch']
  #allocation2 [shape = 'f32[8,128]{1,0:T(8,128)}', space=vmem, size = 0x1000, scoped, tag = 'scratch operand']
  #allocation3 [shape = 'f32[8,128]{1,0:T(8,128)}', space=vmem, size = 0x1000, scoped, tag = 'scratch operand']
  %s0 = inlined_call_operand.vmem [shape: f32[8,8,512], index: 0, kind: input, shape index: {}]
  %s1 = inlined_call_operand.vmem [shape: bf16[128,512], index: 1, kind: input, shape index: {}]
  %s2 = inlined_call_operand.vmem [shape: f32[8,128], index: 2, kind: input, shape index: {}]
  %s3 = inlined_call_operand.vmem [shape: f32[8,128], index: 3, kind: input, shape index: {}]
  %s4 = inlined_call_operand.vmem [shape: bf16[8,8,128], index: 4, kind: output, shape index: {0}]
  %s5 = inlined_call_operand.hbm [shape: f32[8,128], index: 5, kind: output, shape index: {1}]
  %s6 = inlined_call_operand.hbm [shape: f32[8,128], index: 6, kind: output, shape index: {2}]
  %7 = xla_tuple %s4, %s5, %s6
  %s8 = sld [smem:[#allocation0]]
  $region57: #{rnn_language_model_forward.6} parent=0
    _
  %s10 = ssub.s32 1, %s8
  %s11 = scalar_select 0, %s10, %s8
  $region1: #{rnn_language_model_forward.6} parent=0
    #allocation4 [shape = 'u8[4096]{0}', space=vmem, size = 0x1000, scoped, tag = 'output window, operand 1, single buffered']
    #allocation5 [shape = 's32[1]{0}', space=sflag, size = 0x4, scoped, tag = 'scoped memory for rnn_language_model_forward.6']
    #allocation6 [shape = 'u8[4096]{0}', space=vmem, size = 0x1000, scoped, tag = 'output window, operand 2, single buffered']
    #allocation7 [shape = 's32[1]{0}', space=sflag, size = 0x4, scoped, tag = 'scoped memory for rnn_language_model_forward.6']
    %12 = vsyncpa [#allocation5], 0
    %13 = vsyncpa [#allocation7], 0
    // Predicated region
    $region2: #{rnn_language_model_forward.6} parent=1 // pred_check
      _
    $region3: #{rnn_language_model_forward.6} parent=1 // pred_check_branch
      %15 = sbr.rel (0) target = $region5
    $region4: #{rnn_language_model_forward.6} parent=1 // pred_region
      _
    $region5: #{rnn_language_model_forward.6} parent=1 // pred_fallthru
      _
    // Predicated region
    $region6: #{rnn_language_model_forward.6} parent=1 // pred_check
      _
    $region7: #{rnn_language_model_forward.6} parent=1 // pred_check_branch
      %17 = sbr.rel (0) target = $region9
    $region8: #{rnn_language_model_forward.6} parent=1 // pred_region
      _
    $region9: #{rnn_language_model_forward.6} parent=1 // pred_fallthru
      _
    // Predicated region
    $region10: #{rnn_language_model_forward.6} parent=1 // pred_check
      _
    $region11: #{rnn_language_model_forward.6} parent=1 // pred_check_branch
      %19 = sbr.rel (0) target = $region13
    $region12: #{rnn_language_model_forward.6} parent=1 // pred_region
      _
    $region13: #{rnn_language_model_forward.6} parent=1 // pred_fallthru
      _
    // Predicated region
    $region14: #{rnn_language_model_forward.6} parent=1 // pred_check
      _
    $region15: #{rnn_language_model_forward.6} parent=1 // pred_check_branch
      %21 = sbr.rel (0) target = $region17
    $region16: #{rnn_language_model_forward.6} parent=1 // pred_region
      _
    $region17: #{rnn_language_model_forward.6} parent=1 // pred_fallthru
      _
    %p23 = scmp.eq.s32.totalorder 0, 0
    // Predicated region
    $region18: #{rnn_language_model_forward.6} parent=1 // pred_check
      %p24 = pneg %p23
    $region19: #{rnn_language_model_forward.6} parent=1 // pred_check_branch
      %26 = sbr.rel (%p24) target = $region21
    $region20: #{rnn_language_model_forward.6} parent=1 // pred_region
      %v27 = vld [vmem:[%s2] sm:$0xff]
      %28 = vst [vmem:[#allocation2] sm:$0xff] %v27
      %v29 = vld [vmem:[%s3] sm:$0xff]
      %30 = vst [vmem:[#allocation3] sm:$0xff] %v29
    $region21: #{rnn_language_model_forward.6} parent=1 // pred_fallthru
      _
    %s31 = smul.u32 0, 8
    %s32 = ssub.s32 8, %s31
    %p33 = scmp.lt.s32.totalorder %s32, 8
    %s34 = scalar_select %p33, %s32, 8
    // While loop
    $region22: #{rnn_language_model_forward.6} parent=1 // loop_pre_header
      _
    $region23: #{rnn_language_model_forward.6} parent=1 // loop_header
      %s36 = sphi 0, %s38
      %p37 = scmp.ge.s32.totalorder %s36, %s34
    $region24: #{rnn_language_model_forward.6} parent=1 // loop_header_branch
      %40 = sbr.rel (%p37) target = $region28
    $region25: #{rnn_language_model_forward.6} parent=1 // loop_body
      %s41 = smul.u32 %s36, 4
      %s42 = smul.addr %s41, 8
      %s43 = scalar_lea.vmem %s0, %s42
      %v44 = vld [vmem:[%s43] sm:$0xff]
      %v45 = vld [vmem:[%s43 + $0x8] sm:$0xff]
      %v46 = vld [vmem:[%s43 + $0x10] sm:$0xff]
      %v47 = vld [vmem:[%s43 + $0x18] sm:$0xff]
      %v48 = vld [vmem:[#allocation2] sm:$0xff]
      %v49 = vpack.c.bf16 %v48, %v48
      %v50 = vld [vmem:[%s1] sm:$0xff]
      %v51 = vld [vmem:[%s1 + $0x8] sm:$0xff]
      %v52 = vld [vmem:[%s1 + $0x10] sm:$0xff]
      %v53 = vld [vmem:[%s1 + $0x18] sm:$0xff]
      %v54 = vld [vmem:[%s1 + $0x20] sm:$0xff]
      %v55 = vld [vmem:[%s1 + $0x28] sm:$0xff]
      %v56 = vld [vmem:[%s1 + $0x30] sm:$0xff]
      %v57 = vld [vmem:[%s1 + $0x38] sm:$0xff]
      %v58 = vld [vmem:[%s1 + $0x40] sm:$0xff]
      %v59 = vld [vmem:[%s1 + $0x48] sm:$0xff]
      %v60 = vld [vmem:[%s1 + $0x50] sm:$0xff]
      %v61 = vld [vmem:[%s1 + $0x58] sm:$0xff]
      %v62 = vld [vmem:[%s1 + $0x60] sm:$0xff]
      %v63 = vld [vmem:[%s1 + $0x68] sm:$0xff]
      %v64 = vld [vmem:[%s1 + $0x70] sm:$0xff]
      %v65 = vld [vmem:[%s1 + $0x78] sm:$0xff]
      %v66 = vld [vmem:[%s1 + $0x80] sm:$0xff]
      %v67 = vld [vmem:[%s1 + $0x88] sm:$0xff]
      %v68 = vld [vmem:[%s1 + $0x90] sm:$0xff]
      %v69 = vld [vmem:[%s1 + $0x98] sm:$0xff]
      %v70 = vld [vmem:[%s1 + $0xa0] sm:$0xff]
      %v71 = vld [vmem:[%s1 + $0xa8] sm:$0xff]
      %v72 = vld [vmem:[%s1 + $0xb0] sm:$0xff]
      %v73 = vld [vmem:[%s1 + $0xb8] sm:$0xff]
      %v74 = vld [vmem:[%s1 + $0xc0] sm:$0xff]
      %v75 = vld [vmem:[%s1 + $0xc8] sm:$0xff]
      %v76 = vld [vmem:[%s1 + $0xd0] sm:$0xff]
      %v77 = vld [vmem:[%s1 + $0xd8] sm:$0xff]
      %v78 = vld [vmem:[%s1 + $0xe0] sm:$0xff]
      %v79 = vld [vmem:[%s1 + $0xe8] sm:$0xff]
      %v80 = vld [vmem:[%s1 + $0xf0] sm:$0xff]
      %v81 = vld [vmem:[%s1 + $0xf8] sm:$0xff]
      %v114 = vunpack.c.l.b16 %v50
      %v115 = vunpack.c.h.b16 %v50
      %v116 = vunpack.c.l.b16 %v51
      %v117 = vunpack.c.h.b16 %v51
      %v118 = vunpack.c.l.b16 %v52
      %v119 = vunpack.c.h.b16 %v52
      %v120 = vunpack.c.l.b16 %v53
      %v121 = vunpack.c.h.b16 %v53
      %v122 = vunpack.c.l.b16 %v54
      %v123 = vunpack.c.h.b16 %v54
      %v124 = vunpack.c.l.b16 %v55
      %v125 = vunpack.c.h.b16 %v55
      %v126 = vunpack.c.l.b16 %v56
      %v127 = vunpack.c.h.b16 %v56
      %v128 = vunpack.c.l.b16 %v57
      %v129 = vunpack.c.h.b16 %v57
      %v130 = vunpack.c.l.b16 %v58
      %v131 = vunpack.c.h.b16 %v58
      %v132 = vunpack.c.l.b16 %v59
      %v133 = vunpack.c.h.b16 %v59
      %v134 = vunpack.c.l.b16 %v60
      %v135 = vunpack.c.h.b16 %v60
      %v136 = vunpack.c.l.b16 %v61
      %v137 = vunpack.c.h.b16 %v61
      %v138 = vunpack.c.l.b16 %v62
      %v139 = vunpack.c.h.b16 %v62
      %v140 = vunpack.c.l.b16 %v63
      %v141 = vunpack.c.h.b16 %v63
      %v142 = vunpack.c.l.b16 %v64
      %v143 = vunpack.c.h.b16 %v64
      %v144 = vunpack.c.l.b16 %v65
      %v145 = vunpack.c.h.b16 %v65
      %v146 = vunpack.c.l.b16 %v66
      %v147 = vunpack.c.h.b16 %v66
      %v148 = vunpack.c.l.b16 %v67
      %v149 = vunpack.c.h.b16 %v67
      %v150 = vunpack.c.l.b16 %v68
      %v151 = vunpack.c.h.b16 %v68
      %v152 = vunpack.c.l.b16 %v69
      %v153 = vunpack.c.h.b16 %v69
      %v154 = vunpack.c.l.b16 %v70
      %v155 = vunpack.c.h.b16 %v70
      %v156 = vunpack.c.l.b16 %v71
      %v157 = vunpack.c.h.b16 %v71
      %v158 = vunpack.c.l.b16 %v72
      %v159 = vunpack.c.h.b16 %v72
      %v160 = vunpack.c.l.b16 %v73
      %v161 = vunpack.c.h.b16 %v73
      %v162 = vunpack.c.l.b16 %v74
      %v163 = vunpack.c.h.b16 %v74
      %v164 = vunpack.c.l.b16 %v75
      %v165 = vunpack.c.h.b16 %v75
      %v166 = vunpack.c.l.b16 %v76
      %v167 = vunpack.c.h.b16 %v76
      %v168 = vunpack.c.l.b16 %v77
      %v169 = vunpack.c.h.b16 %v77
      %v170 = vunpack.c.l.b16 %v78
      %v171 = vunpack.c.h.b16 %v78
      %v172 = vunpack.c.l.b16 %v79
      %v173 = vunpack.c.h.b16 %v79
      %v174 = vunpack.c.l.b16 %v80
      %v175 = vunpack.c.h.b16 %v80
      %v176 = vunpack.c.l.b16 %v81
      %v177 = vunpack.c.h.b16 %v81
      %v178 = vpack.c.b16 %v118, %v114
      %v179 = vpack.c.b16 %v119, %v115
      %v180 = vpack.c.b16 %v120, %v116
      %v181 = vpack.c.b16 %v121, %v117
      %v182 = vpack.c.b16 %v126, %v122
      %v183 = vpack.c.b16 %v127, %v123
      %v184 = vpack.c.b16 %v128, %v124
      %v185 = vpack.c.b16 %v129, %v125
      %v186 = vpack.c.b16 %v134, %v130
      %v187 = vpack.c.b16 %v135, %v131
      %v188 = vpack.c.b16 %v136, %v132
      %v189 = vpack.c.b16 %v137, %v133
      %v190 = vpack.c.b16 %v142, %v138
      %v191 = vpack.c.b16 %v143, %v139
      %v192 = vpack.c.b16 %v144, %v140
      %v193 = vpack.c.b16 %v145, %v141
      %v194 = vpack.c.b16 %v150, %v146
      %v195 = vpack.c.b16 %v151, %v147
      %v196 = vpack.c.b16 %v152, %v148
      %v197 = vpack.c.b16 %v153, %v149
      %v198 = vpack.c.b16 %v158, %v154
      %v199 = vpack.c.b16 %v159, %v155
      %v200 = vpack.c.b16 %v160, %v156
      %v201 = vpack.c.b16 %v161, %v157
      %v202 = vpack.c.b16 %v166, %v162
      %v203 = vpack.c.b16 %v167, %v163
      %v204 = vpack.c.b16 %v168, %v164
      %v205 = vpack.c.b16 %v169, %v165
      %v206 = vpack.c.b16 %v174, %v170
      %v207 = vpack.c.b16 %v175, %v171
      %v208 = vpack.c.b16 %v176, %v172
      %v209 = vpack.c.b16 %v177, %v173
      %242 = vmatprep.subr.bf16.mxu0 %v207
      %243 = vmatpush1.bf16.msra.mxu0 %v206
      %244 = vmatprep.subr.bf16.mxu0 %v203
      %245 = vmatpush1.bf16.msra.mxu0 %v202
      %246 = vmatprep.subr.bf16.mxu0 %v199
      %247 = vmatpush1.bf16.msra.mxu0 %v198
      %248 = vmatprep.subr.bf16.mxu0 %v195
      %249 = vmatpush1.bf16.msra.mxu0 %v194
      %250 = vmatprep.subr.bf16.mxu0 %v191
      %251 = vmatpush1.bf16.msra.mxu0 %v190
      %252 = vmatprep.subr.bf16.mxu0 %v187
      %253 = vmatpush1.bf16.msra.mxu0 %v186
      %254 = vmatprep.subr.bf16.mxu0 %v183
      %255 = vmatpush1.bf16.msra.mxu0 %v182
      %256 = vmatprep.subr.bf16.mxu0 %v179
      %257 = vmatpush1.bf16.msra.mxu0 %v178
      %258 = vmatprep.subr.bf16.mxu0 0
      %259 = vmatpush2.bf16.msra.mxu0 0
      %260 = vmatprep.subr.bf16.mxu0 0
      %261 = vmatpush2.bf16.msra.mxu0 0
      %262 = vmatprep.subr.bf16.mxu0 0
      %263 = vmatpush2.bf16.msra.mxu0 0
      %264 = vmatprep.subr.bf16.mxu0 0
      %265 = vmatpush2.bf16.msra.mxu0 0
      %266 = vmatprep.subr.bf16.mxu0 0
      %267 = vmatpush2.bf16.msra.mxu0 0
      %268 = vmatprep.subr.bf16.mxu0 0
      %269 = vmatpush2.bf16.msra.mxu0 0
      %270 = vmatprep.subr.bf16.mxu0 0
      %271 = vmatpush2.bf16.msra.mxu0 0
      %272 = vmatprep.subr.bf16.mxu0 0
      %273 = vmatpush2.bf16.msra.mxu0 0
      %274 = vmatprep.mubr.bf16.mxu0 0
      %275 = vmatmul.mubr.bf16.gmra.mxu0 %v49
      %v276 = vpop.f32.mrf.mxu0
      %v277 = vadd.f32 0.0, %v276
      %v278 = vpop.f32.mrf.mxu0
      %v279 = vadd.f32 0.0, %v278
      %v280 = vpop.f32.mrf.mxu0
      %v281 = vpop.f32.mrf.mxu0
      %282 = vdwg.mxu0
      %283 = vmatprep.subr.bf16.mxu0 %v209
      %284 = vmatpush1.bf16.msra.mxu0 %v208
      %285 = vmatprep.subr.bf16.mxu0 %v205
      %286 = vmatpush1.bf16.msra.mxu0 %v204
      %287 = vmatprep.subr.bf16.mxu0 %v201
      %288 = vmatpush1.bf16.msra.mxu0 %v200
      %289 = vmatprep.subr.bf16.mxu0 %v197
      %290 = vmatpush1.bf16.msra.mxu0 %v196
      %291 = vmatprep.subr.bf16.mxu0 %v193
      %292 = vmatpush1.bf16.msra.mxu0 %v192
      %293 = vmatprep.subr.bf16.mxu0 %v189
      %294 = vmatpush1.bf16.msra.mxu0 %v188
      %295 = vmatprep.subr.bf16.mxu0 %v185
      %296 = vmatpush1.bf16.msra.mxu0 %v184
      %297 = vmatprep.subr.bf16.mxu0 %v181
      %298 = vmatpush1.bf16.msra.mxu0 %v180
      %299 = vmatprep.subr.bf16.mxu0 0
      %300 = vmatpush2.bf16.msra.mxu0 0
      %301 = vmatprep.subr.bf16.mxu0 0
      %302 = vmatpush2.bf16.msra.mxu0 0
      %303 = vmatprep.subr.bf16.mxu0 0
      %304 = vmatpush2.bf16.msra.mxu0 0
      %305 = vmatprep.subr.bf16.mxu0 0
      %306 = vmatpush2.bf16.msra.mxu0 0
      %307 = vmatprep.subr.bf16.mxu0 0
      %308 = vmatpush2.bf16.msra.mxu0 0
      %309 = vmatprep.subr.bf16.mxu0 0
      %310 = vmatpush2.bf16.msra.mxu0 0
      %311 = vmatprep.subr.bf16.mxu0 0
      %312 = vmatpush2.bf16.msra.mxu0 0
      %313 = vmatprep.subr.bf16.mxu0 0
      %314 = vmatpush2.bf16.msra.mxu0 0
      %315 = vmatprep.mubr.bf16.mxu0 0
      %316 = vmatmul.mubr.bf16.gmra.mxu0 %v49
      %v317 = vpop.f32.mrf.mxu0
      %v318 = vadd.f32 0.0, %v317
      %v319 = vpop.f32.mrf.mxu0
      %v320 = vadd.f32 0.0, %v319
      %v321 = vpop.f32.mrf.mxu0
      %v322 = vpop.f32.mrf.mxu0
      %323 = vdwg.mxu0
      %v324 = vadd.f32 %v44, %v277
      %v325 = vadd.f32 %v45, %v279
      %v326 = vadd.f32 %v46, %v318
      %v327 = vadd.f32 %v47, %v320
      %v328 = vxor.u32 %v324, 2147483648
      %v329 = vmul.f32 %v328, 1.442695
      %v330 = vpow.pop %v329
      %v331 = vadd.f32 %v330, 1.0
      %v332 = vrcp.pop %v331
      %v333 = vmul.f32 1.0, %v332
      %v334 = vxor.u32 %v325, 2147483648
      %v335 = vmul.f32 %v334, 1.442695
      %v336 = vpow.pop %v335
      %v337 = vadd.f32 %v336, 1.0
      %v338 = vrcp.pop %v337
      %v339 = vmul.f32 1.0, %v338
      %v340 = vtanh.pop %v326
      %v341 = vxor.u32 %v327, 2147483648
      %v342 = vmul.f32 %v341, 1.442695
      %v343 = vpow.pop %v342
      %v344 = vadd.f32 %v343, 1.0
      %v345 = vrcp.pop %v344
      %v346 = vmul.f32 1.0, %v345
      %v347 = vld [vmem:[#allocation3] sm:$0xff]
      %v348 = vmul.f32 %v339, %v347
      %v349 = vmul.f32 %v333, %v340
      %v350 = vadd.f32 %v348, %v349
      %v351 = vtanh.pop %v350
      %v352 = vmul.f32 %v346, %v351
      %353 = vst [vmem:[#allocation3] sm:$0xff] %v350
      %354 = vst [vmem:[#allocation2] sm:$0xff] %v352
      %v355 = vpack.c.bf16 %v352, %v352
      %s356 = smul.addr %s36, 4
      %s357 = scalar_lea.vmem %s4, %s356
      %358 = vst [vmem:[%s357] sm:$0xf] %v355
    $region26: #{rnn_language_model_forward.6} parent=1 // loop_footer
      %s38 = sadd.s32 %s36, 1
    $region27: #{rnn_language_model_forward.6} parent=1 // loop_footer_branch
      %35 = sbr.rel target = $region23
    $region28: #{rnn_language_model_forward.6} parent=1 // loop_exit
      _
    // Predicated region
    $region29: #{rnn_language_model_forward.6} parent=1 // pred_check
      %p359 = pneg %p23
    $region30: #{rnn_language_model_forward.6} parent=1 // pred_check_branch
      %361 = sbr.rel (%p359) target = $region32
    $region31: #{rnn_language_model_forward.6} parent=1 // pred_region
      %v362 = vld [vmem:[#allocation2] sm:$0xff]
      %363 = vst [vmem:[#allocation4] sm:$0xff] %v362
      %v364 = vld [vmem:[#allocation3] sm:$0xff]
      %365 = vst [vmem:[#allocation6] sm:$0xff] %v364
    $region32: #{rnn_language_model_forward.6} parent=1 // pred_fallthru
      _
    // Predicated region
    $region33: #{rnn_language_model_forward.6} parent=1 // pred_check
      _
    $region34: #{rnn_language_model_forward.6} parent=1 // pred_check_branch
      %367 = sbr.rel (0) target = $region36
    $region35: #{rnn_language_model_forward.6} parent=1 // pred_region
      _
    $region36: #{rnn_language_model_forward.6} parent=1 // pred_fallthru
      _
    // Predicated region
    $region37: #{rnn_language_model_forward.6} parent=1 // pred_check
      _
    $region38: #{rnn_language_model_forward.6} parent=1 // pred_check_branch
      %369 = sbr.rel (0) target = $region40
    $region39: #{rnn_language_model_forward.6} parent=1 // pred_region
      %s371 = ssub.s32 128, 128
      %372 = vsyncadd [#allocation5], %s371
      %s374 = sshll.u32 [#allocation4], 4
      %s375 = int_to_ptr.vmem [resolvable:$true] %s374
      %377 = dma.vmem_to_hbm [thread:$0]  %s375, 128, %s5, [#allocation5]
    $region40: #{rnn_language_model_forward.6} parent=1 // pred_fallthru
      _
    // Predicated region
    $region41: #{rnn_language_model_forward.6} parent=1 // pred_check
      _
    $region42: #{rnn_language_model_forward.6} parent=1 // pred_check_branch
      %379 = sbr.rel (0) target = $region44
    $region43: #{rnn_language_model_forward.6} parent=1 // pred_region
      %s381 = ssub.s32 128, 128
      %382 = vsyncadd [#allocation7], %s381
      %s384 = sshll.u32 [#allocation6], 4
      %s385 = int_to_ptr.vmem [resolvable:$true] %s384
      %387 = dma.vmem_to_hbm [thread:$0]  %s385, 128, %s6, [#allocation7]
    $region44: #{rnn_language_model_forward.6} parent=1 // pred_fallthru
      _
    // Predicated region
    $region45: #{rnn_language_model_forward.6} parent=1 // pred_check
      _
    $region46: #{rnn_language_model_forward.6} parent=1 // pred_check_branch
      %389 = sbr.rel (0) target = $region48
    $region47: #{rnn_language_model_forward.6} parent=1 // pred_region
      _
    $region48: #{rnn_language_model_forward.6} parent=1 // pred_fallthru
      _
    // Predicated region
    $region49: #{rnn_language_model_forward.6} parent=1 // pred_check
      _
    $region50: #{rnn_language_model_forward.6} parent=1 // pred_check_branch
      %391 = sbr.rel (0) target = $region52
    $region51: #{rnn_language_model_forward.6} parent=1 // pred_region
      %392 = dma.done [#allocation5], 128
    $region52: #{rnn_language_model_forward.6} parent=1 // pred_fallthru
      _
    // Predicated region
    $region53: #{rnn_language_model_forward.6} parent=1 // pred_check
      _
    $region54: #{rnn_language_model_forward.6} parent=1 // pred_check_branch
      %394 = sbr.rel (0) target = $region56
    $region55: #{rnn_language_model_forward.6} parent=1 // pred_region
      %395 = dma.done [#allocation7], 128
    $region56: #{rnn_language_model_forward.6} parent=1 // pred_fallthru
      _
    %396 = vsyncpa [#allocation5], 1
    %397 = vsyncpa [#allocation7], 1

</llo_original>
